<compile_context>
chip_gen: v5e
topology: v5e:2x2
jax: 0.10.0
libtpu: 0.0.40
codegen_flags: <defaults>
</compile_context>

<pallas_src>
import functools

import jax
import jax.numpy as jnp
from jax.experimental import pallas as pl
from jax.experimental.pallas import tpu as pltpu  # noqa: F401  (kept for parity; no scratch needed)


def ynnet_kernel(tok_ref, table_ref, whh_ref, h0_ref, c0_ref, wfc_ref, bfc_ref,
                 logits_ref, ht_ref, ct_ref):
    """Whole forward (embedding gather + LSTM + FC) in a single invocation (no grid).

    tok_ref:    (S*B, 1) int32   token ids, seq-major
    table_ref:  (V, 4H)  f32     fused Emb @ W_ih^T + (b_ih + b_hh); i/f/o cols pre-scaled by 0.5
    whh_ref:    (H, 4H)  f32     W_hh^T; i/f/o cols pre-scaled by 0.5
    h0_ref:     (B, H)   f32     initial hidden state
    c0_ref:     (B, H)   f32     initial cell state
    wfc_ref:    (H, Vp)  f32     W_fc^T zero-padded to Vp=128 lanes (lane-dense stores)
    bfc_ref:    (1, Vp)  f32     b_fc zero-padded
    logits_ref: (S*B, Vp) f32    logits (wrapper slices [:, :V])
    ht_ref/ct_ref: (B, H) f32    final hidden / cell state
    """
    B, H = h0_ref.shape
    SB = tok_ref.shape[0]
    S = SB // B
    V = table_ref.shape[0]

    # ---- Prologue (off the serial path) -------------------------------------------
    # Fused embedding gather + input projection + bias as ONE one-hot MXU matmul:
    #   gates_x[r] = Emb[tok[r]] @ W_ih^T + b  ==  onehot(tok)[r] @ table
    toks = tok_ref[...]                                                   # (S*B, 1) i32
    onehot = jnp.where(
        toks == jax.lax.broadcasted_iota(jnp.int32, (SB, V), 1),
        jnp.float32(1.0), jnp.float32(0.0))                               # (S*B, V)
    gx = jnp.dot(onehot, table_ref[...],
                 preferred_element_type=jnp.float32)                      # (S*B, 4H)

    whh = whh_ref[...]        # loaded once; RHS is loop-invariant across all steps
    h = h0_ref[...]           # (B, H)
    c = c0_ref[...]           # (B, H)

    # sigmoid(z) = 0.5*tanh(z/2) + 0.5; the /2 for i,f,o is baked into the packed
    # weights, so one tanh pass + one constant affine fixup yields all four gates.
    # Constant fixup vregs are hoisted out of the loop.
    lane = jax.lax.broadcasted_iota(jnp.int32, (1, 4 * H), 1)
    is_g = jnp.logical_and(lane >= 2 * H, lane < 3 * H)
    fix_mul = jnp.where(is_g, jnp.float32(1.0), jnp.float32(0.5))         # (1, 4H)
    fix_add = jnp.where(is_g, jnp.float32(0.0), jnp.float32(0.5))         # (1, 4H)

    # ---- Recurrence: only h @ W_hh^T + gate math stays serial ----------------------
    # S is small & static -> fully unrolled at trace time (full LLO scheduling view).
    hs = []
    for t in range(S):
        gates = gx[t * B:(t + 1) * B, :] + jnp.dot(
            h, whh, preferred_element_type=jnp.float32)                   # (B, 4H)
        act = jnp.tanh(gates) * fix_mul + fix_add                         # i,f,o=sigmoid; g=tanh
        i_g = act[:, 0 * H:1 * H]
        f_g = act[:, 1 * H:2 * H]
        g_g = act[:, 2 * H:3 * H]
        o_g = act[:, 3 * H:4 * H]
        c = f_g * c + i_g * g_g
        h = o_g * jnp.tanh(c)
        hs.append(h)

    ht_ref[...] = h
    ct_ref[...] = c

    # ---- Epilogue (off the serial path): one batched, lane-dense output projection ---
    # Hidden sequence stays in vregs; single (S*B, Vp) full-vreg store.
    # TODO(synk): Dropout(0.2) is stochastic in train mode; eval-mode identity here.
    hseq = jnp.concatenate(hs, axis=0)                                    # (S*B, H)
    logits_ref[...] = (jnp.dot(hseq, wfc_ref[...],
                               preferred_element_type=jnp.float32)
                       + bfc_ref[...])


def pack_params(params, *, logit_pad=128):
    """One-time weight packing (call once at parameter-setup time, NOT per forward)."""
    emb = params["embedding"].astype(jnp.float32)                 # (V, E)
    w_ih = params["w_ih"].astype(jnp.float32)                     # (4H, E)
    w_hh = params["w_hh"].astype(jnp.float32)                     # (4H, H)
    b = (params["b_ih"] + params["b_hh"]).astype(jnp.float32)     # (4H,)
    w_fc = params["w_fc"].astype(jnp.float32)                     # (V, H)
    b_fc = params["b_fc"].astype(jnp.float32)                     # (V,)

    fourH = w_ih.shape[0]
    H = fourH // 4
    V = w_fc.shape[0]

    # 0.5 pre-scale on i/f/o gate columns (sigmoid-via-tanh trick); 1.0 on g columns.
    col = jnp.arange(fourH)
    scale = jnp.where((col >= 2 * H) & (col < 3 * H), 1.0, 0.5).astype(jnp.float32)

    # Fused embedding + input projection + bias lookup table, gate order i,f,g,o.
    table = (emb @ w_ih.T + b[None, :]) * scale[None, :]          # (V, 4H)
    whh_t = w_hh.T * scale[None, :]                               # (H, 4H)

    # Lane-dense FC: pad output columns to a multiple of 128 (static, once).
    Vp = max(logit_pad, ((V + logit_pad - 1) // logit_pad) * logit_pad)
    wfc_t = jnp.zeros((H, Vp), jnp.float32).at[:, :V].set(w_fc.T)  # (H, Vp)
    bfc = jnp.zeros((1, Vp), jnp.float32).at[:, :V].set(b_fc)      # (1, Vp)

    return {"table": table, "whh_t": whh_t, "wfc_t": wfc_t, "bfc": bfc}


@functools.partial(jax.jit, static_argnames=("vocab",))
def ynnet_forward(tokens, hidden, packed, *, vocab):
    """tokens: (S, B, 1) int; hidden: (h0, c0) each (1, B, H); packed: pack_params output."""
    h0, c0 = hidden
    S, B, _ = tokens.shape
    H = packed["whh_t"].shape[0]
    Vp = packed["wfc_t"].shape[1]

    tok2d = tokens.reshape(S * B, 1).astype(jnp.int32)
    h0b = h0.reshape(B, H).astype(jnp.float32)
    c0b = c0.reshape(B, H).astype(jnp.float32)

    # Single grid-less invocation: all operands (~tens of KB) are VMEM-resident,
    # no per-step pipeline overhead, weights loaded once.
    logits_p, ht, ct = pl.pallas_call(
        ynnet_kernel,
        out_shape=(
            jax.ShapeDtypeStruct((S * B, Vp), jnp.float32),
            jax.ShapeDtypeStruct((B, H), jnp.float32),
            jax.ShapeDtypeStruct((B, H), jnp.float32),
        ),
    )(tok2d, packed["table"], packed["whh_t"], h0b, c0b,
      packed["wfc_t"], packed["bfc"])

    logits = logits_p.reshape(S, B, Vp)[:, :, :vocab]              # (S, B, V)
    return logits, (ht[None], ct[None])


def ynnet_reference(tokens, hidden, params):
    """Pure-JAX reference matching torch.nn.LSTM semantics (gate order i,f,g,o)."""
    h0, c0 = hidden
    emb_tbl = params["embedding"]
    w_ih, w_hh = params["w_ih"], params["w_hh"]
    b_ih, b_hh = params["b_ih"], params["b_hh"]
    w_fc, b_fc = params["w_fc"], params["b_fc"]
    H = h0.shape[-1]

    x_emb = jnp.squeeze(jnp.take(emb_tbl, tokens, axis=0), axis=2)

    def step(carry, x_t):
        h, c = carry
        gates = x_t @ w_ih.T + b_ih + h @ w_hh.T + b_hh
        i = jax.nn.sigmoid(gates[:, 0 * H:1 * H])
        f = jax.nn.sigmoid(gates[:, 1 * H:2 * H])
        g = jnp.tanh(gates[:, 2 * H:3 * H])
        o = jax.nn.sigmoid(gates[:, 3 * H:4 * H])
        c_new = f * c + i * g
        h_new = o * jnp.tanh(c_new)
        return (h_new, c_new), h_new

    (h_f, c_f), outs = jax.lax.scan(step, (h0[0], c0[0]), x_emb)
    logits = outs @ w_fc.T + b_fc
    return logits, (h_f[None], c_f[None])


if __name__ == "__main__":
    # Module hyper-parameters (small, consistent with the nn.Module __init__).
    input_size = 64      # vocab size
    hidden_size = 32
    embedding_size = 32
    n_layers = 1
    seq_len = 8
    batch = 2

    key = jax.random.PRNGKey(0)
    keys = jax.random.split(key, 8)
    scale = 0.1

    params = {
        "embedding": scale * jax.random.normal(keys[0], (input_size, embedding_size), jnp.float32),
        "w_ih": scale * jax.random.normal(keys[1], (4 * hidden_size, embedding_size), jnp.float32),
        "w_hh": scale * jax.random.normal(keys[2], (4 * hidden_size, hidden_size), jnp.float32),
        "b_ih": scale * jax.random.normal(keys[3], (4 * hidden_size,), jnp.float32),
        "b_hh": scale * jax.random.normal(keys[4], (4 * hidden_size,), jnp.float32),
        "w_fc": scale * jax.random.normal(keys[5], (input_size, hidden_size), jnp.float32),
        "b_fc": scale * jax.random.normal(keys[6], (input_size,), jnp.float32),
    }

    tokens = jax.random.randint(keys[7], (seq_len, batch, 1), 0, input_size, jnp.int32)
    # init_hidden(batch_size): zeros of shape (n_layers, batch, hidden)
    h0 = jnp.zeros((n_layers, batch, hidden_size), jnp.float32)
    c0 = jnp.zeros((n_layers, batch, hidden_size), jnp.float32)

    packed = pack_params(params)   # one-time weight packing (not per forward call)

    logits, (ht, ct) = ynnet_forward(tokens, (h0, c0), packed, vocab=input_size)
    jax.block_until_ready((logits, ht, ct))

    # Correctness check against pure-JAX reference of the PyTorch semantics.
    # (Tolerance 1e-4: the fused table and sigmoid-via-tanh paths differ from the
    #  reference only by f32/EUP rounding.)
    ref_logits, (ref_ht, ref_ct) = ynnet_reference(tokens, (h0, c0), params)
    assert jnp.allclose(logits, ref_logits, atol=1e-4, rtol=1e-4)
    assert jnp.allclose(ht, ref_ht, atol=1e-4, rtol=1e-4)
    assert jnp.allclose(ct, ref_ct, atol=1e-4, rtol=1e-4)

    print("KERNEL_OK")
</pallas_src>

<mosaic_0001>
module attributes {stable_mosaic.version = 11 : i64} {
  func.func @ynnet_kernel(%arg0: memref<16x1xi32, #tpu.memory_space<vmem>>, %arg1: memref<64x128xf32, #tpu.memory_space<vmem>>, %arg2: memref<32x128xf32, #tpu.memory_space<vmem>>, %arg3: memref<2x32xf32, #tpu.memory_space<vmem>>, %arg4: memref<2x32xf32, #tpu.memory_space<vmem>>, %arg5: memref<32x128xf32, #tpu.memory_space<vmem>>, %arg6: memref<1x128xf32, #tpu.memory_space<vmem>>, %arg7: memref<16x128xf32, #tpu.memory_space<vmem>>, %arg8: memref<2x32xf32, #tpu.memory_space<vmem>>, %arg9: memref<2x32xf32, #tpu.memory_space<vmem>>) attributes {dimension_semantics = [], scalar_prefetch = 0 : i64, scratch_operands = 0 : i64, tpu.core_type = #tpu.core_type<tc>} {
    %c0 = arith.constant 0 : index
    %c0_0 = arith.constant 0 : index
    %0 = vector.load %arg0[%c0, %c0_0] : memref<16x1xi32, #tpu.memory_space<vmem>>, vector<16x1xi32>
    %1 = tpu.iota {dimensions = array<i32: 1>} : vector<16x64xi32>
    %2 = vector.broadcast %0 : vector<16x1xi32> to vector<16x64xi32>
    %3 = arith.cmpi eq, %2, %1 : vector<16x64xi32>
    %cst = arith.constant 1.000000e+00 : f32
    %cst_1 = arith.constant 0.000000e+00 : f32
    %4 = vector.broadcast %cst : f32 to vector<16x64xf32>
    %5 = vector.broadcast %cst_1 : f32 to vector<16x64xf32>
    %6 = arith.select %3, %4, %5 : vector<16x64xi1>, vector<16x64xf32>
    %c0_2 = arith.constant 0 : index
    %c0_3 = arith.constant 0 : index
    %7 = vector.load %arg1[%c0_2, %c0_3] : memref<64x128xf32, #tpu.memory_space<vmem>>, vector<64x128xf32>
    %cst_4 = arith.constant dense<0.000000e+00> : vector<16x128xf32>
    %8 = tpu.matmul %6, %7, %cst_4 {dimension_numbers = #tpu.dot_dimension_numbers<[1], [0], [0], [1], [0, 0, 1, 1], [], []>} : vector<16x64xf32>, vector<64x128xf32>, vector<16x128xf32> -> vector<16x128xf32>
    %c0_5 = arith.constant 0 : index
    %c0_6 = arith.constant 0 : index
    %9 = vector.load %arg2[%c0_5, %c0_6] : memref<32x128xf32, #tpu.memory_space<vmem>>, vector<32x128xf32>
    %c0_7 = arith.constant 0 : index
    %c0_8 = arith.constant 0 : index
    %10 = vector.load %arg3[%c0_7, %c0_8] : memref<2x32xf32, #tpu.memory_space<vmem>>, vector<2x32xf32>
    %c0_9 = arith.constant 0 : index
    %c0_10 = arith.constant 0 : index
    %11 = vector.load %arg4[%c0_9, %c0_10] : memref<2x32xf32, #tpu.memory_space<vmem>>, vector<2x32xf32>
    %12 = tpu.iota {dimensions = array<i32: 1>} : vector<1x128xi32>
    %c64_i32 = arith.constant 64 : i32
    %13 = vector.broadcast %c64_i32 : i32 to vector<1x128xi32>
    %14 = arith.cmpi sge, %12, %13 : vector<1x128xi32>
    %c96_i32 = arith.constant 96 : i32
    %15 = vector.broadcast %c96_i32 : i32 to vector<1x128xi32>
    %16 = arith.cmpi slt, %12, %15 : vector<1x128xi32>
    %17 = arith.andi %14, %16 : vector<1x128xi1>
    %cst_11 = arith.constant 1.000000e+00 : f32
    %cst_12 = arith.constant 5.000000e-01 : f32
    %18 = vector.broadcast %cst_11 : f32 to vector<1x128xf32>
    %19 = vector.broadcast %cst_12 : f32 to vector<1x128xf32>
    %20 = arith.select %17, %18, %19 : vector<1x128xi1>, vector<1x128xf32>
    %cst_13 = arith.constant 0.000000e+00 : f32
    %cst_14 = arith.constant 5.000000e-01 : f32
    %21 = vector.broadcast %cst_13 : f32 to vector<1x128xf32>
    %22 = vector.broadcast %cst_14 : f32 to vector<1x128xf32>
    %23 = arith.select %17, %21, %22 : vector<1x128xi1>, vector<1x128xf32>
    %24 = vector.extract_strided_slice %8 {offsets = [0, 0], sizes = [2, 128], strides = [1, 1]} : vector<16x128xf32> to vector<2x128xf32>
    %cst_15 = arith.constant dense<0.000000e+00> : vector<2x128xf32>
    %25 = tpu.matmul %10, %9, %cst_15 {dimension_numbers = #tpu.dot_dimension_numbers<[1], [0], [0], [1], [0, 0, 1, 1], [], []>} : vector<2x32xf32>, vector<32x128xf32>, vector<2x128xf32> -> vector<2x128xf32>
    %26 = arith.addf %24, %25 : vector<2x128xf32>
    %27 = math.tanh %26 : vector<2x128xf32>
    %28 = vector.broadcast %20 : vector<1x128xf32> to vector<2x128xf32>
    %29 = arith.mulf %27, %28 : vector<2x128xf32>
    %30 = vector.broadcast %23 : vector<1x128xf32> to vector<2x128xf32>
    %31 = arith.addf %29, %30 : vector<2x128xf32>
    %32 = vector.extract_strided_slice %31 {offsets = [0, 0], sizes = [2, 32], strides = [1, 1]} : vector<2x128xf32> to vector<2x32xf32>
    %33 = vector.extract_strided_slice %31 {offsets = [0, 32], sizes = [2, 32], strides = [1, 1]} : vector<2x128xf32> to vector<2x32xf32>
    %34 = vector.extract_strided_slice %31 {offsets = [0, 64], sizes = [2, 32], strides = [1, 1]} : vector<2x128xf32> to vector<2x32xf32>
    %35 = vector.extract_strided_slice %31 {offsets = [0, 96], sizes = [2, 32], strides = [1, 1]} : vector<2x128xf32> to vector<2x32xf32>
    %36 = arith.mulf %33, %11 : vector<2x32xf32>
    %37 = arith.mulf %32, %34 : vector<2x32xf32>
    %38 = arith.addf %36, %37 : vector<2x32xf32>
    %39 = math.tanh %38 : vector<2x32xf32>
    %40 = arith.mulf %35, %39 : vector<2x32xf32>
    %41 = vector.extract_strided_slice %8 {offsets = [2, 0], sizes = [2, 128], strides = [1, 1]} : vector<16x128xf32> to vector<2x128xf32>
    %cst_16 = arith.constant dense<0.000000e+00> : vector<2x128xf32>
    %42 = tpu.matmul %40, %9, %cst_16 {dimension_numbers = #tpu.dot_dimension_numbers<[1], [0], [0], [1], [0, 0, 1, 1], [], []>} : vector<2x32xf32>, vector<32x128xf32>, vector<2x128xf32> -> vector<2x128xf32>
    %43 = arith.addf %41, %42 : vector<2x128xf32>
    %44 = math.tanh %43 : vector<2x128xf32>
    %45 = vector.broadcast %20 : vector<1x128xf32> to vector<2x128xf32>
    %46 = arith.mulf %44, %45 : vector<2x128xf32>
    %47 = vector.broadcast %23 : vector<1x128xf32> to vector<2x128xf32>
    %48 = arith.addf %46, %47 : vector<2x128xf32>
    %49 = vector.extract_strided_slice %48 {offsets = [0, 0], sizes = [2, 32], strides = [1, 1]} : vector<2x128xf32> to vector<2x32xf32>
    %50 = vector.extract_strided_slice %48 {offsets = [0, 32], sizes = [2, 32], strides = [1, 1]} : vector<2x128xf32> to vector<2x32xf32>
    %51 = vector.extract_strided_slice %48 {offsets = [0, 64], sizes = [2, 32], strides = [1, 1]} : vector<2x128xf32> to vector<2x32xf32>
    %52 = vector.extract_strided_slice %48 {offsets = [0, 96], sizes = [2, 32], strides = [1, 1]} : vector<2x128xf32> to vector<2x32xf32>
    %53 = arith.mulf %50, %38 : vector<2x32xf32>
    %54 = arith.mulf %49, %51 : vector<2x32xf32>
    %55 = arith.addf %53, %54 : vector<2x32xf32>
    %56 = math.tanh %55 : vector<2x32xf32>
    %57 = arith.mulf %52, %56 : vector<2x32xf32>
    %58 = vector.extract_strided_slice %8 {offsets = [4, 0], sizes = [2, 128], strides = [1, 1]} : vector<16x128xf32> to vector<2x128xf32>
    %cst_17 = arith.constant dense<0.000000e+00> : vector<2x128xf32>
    %59 = tpu.matmul %57, %9, %cst_17 {dimension_numbers = #tpu.dot_dimension_numbers<[1], [0], [0], [1], [0, 0, 1, 1], [], []>} : vector<2x32xf32>, vector<32x128xf32>, vector<2x128xf32> -> vector<2x128xf32>
    %60 = arith.addf %58, %59 : vector<2x128xf32>
    %61 = math.tanh %60 : vector<2x128xf32>
    %62 = vector.broadcast %20 : vector<1x128xf32> to vector<2x128xf32>
    %63 = arith.mulf %61, %62 : vector<2x128xf32>
    %64 = vector.broadcast %23 : vector<1x128xf32> to vector<2x128xf32>
    %65 = arith.addf %63, %64 : vector<2x128xf32>
    %66 = vector.extract_strided_slice %65 {offsets = [0, 0], sizes = [2, 32], strides = [1, 1]} : vector<2x128xf32> to vector<2x32xf32>
    %67 = vector.extract_strided_slice %65 {offsets = [0, 32], sizes = [2, 32], strides = [1, 1]} : vector<2x128xf32> to vector<2x32xf32>
    %68 = vector.extract_strided_slice %65 {offsets = [0, 64], sizes = [2, 32], strides = [1, 1]} : vector<2x128xf32> to vector<2x32xf32>
    %69 = vector.extract_strided_slice %65 {offsets = [0, 96], sizes = [2, 32], strides = [1, 1]} : vector<2x128xf32> to vector<2x32xf32>
    %70 = arith.mulf %67, %55 : vector<2x32xf32>
    %71 = arith.mulf %66, %68 : vector<2x32xf32>
    %72 = arith.addf %70, %71 : vector<2x32xf32>
    %73 = math.tanh %72 : vector<2x32xf32>
    %74 = arith.mulf %69, %73 : vector<2x32xf32>
    %75 = vector.extract_strided_slice %8 {offsets = [6, 0], sizes = [2, 128], strides = [1, 1]} : vector<16x128xf32> to vector<2x128xf32>
    %cst_18 = arith.constant dense<0.000000e+00> : vector<2x128xf32>
    %76 = tpu.matmul %74, %9, %cst_18 {dimension_numbers = #tpu.dot_dimension_numbers<[1], [0], [0], [1], [0, 0, 1, 1], [], []>} : vector<2x32xf32>, vector<32x128xf32>, vector<2x128xf32> -> vector<2x128xf32>
    %77 = arith.addf %75, %76 : vector<2x128xf32>
    %78 = math.tanh %77 : vector<2x128xf32>
    %79 = vector.broadcast %20 : vector<1x128xf32> to vector<2x128xf32>
    %80 = arith.mulf %78, %79 : vector<2x128xf32>
    %81 = vector.broadcast %23 : vector<1x128xf32> to vector<2x128xf32>
    %82 = arith.addf %80, %81 : vector<2x128xf32>
    %83 = vector.extract_strided_slice %82 {offsets = [0, 0], sizes = [2, 32], strides = [1, 1]} : vector<2x128xf32> to vector<2x32xf32>
    %84 = vector.extract_strided_slice %82 {offsets = [0, 32], sizes = [2, 32], strides = [1, 1]} : vector<2x128xf32> to vector<2x32xf32>
    %85 = vector.extract_strided_slice %82 {offsets = [0, 64], sizes = [2, 32], strides = [1, 1]} : vector<2x128xf32> to vector<2x32xf32>
    %86 = vector.extract_strided_slice %82 {offsets = [0, 96], sizes = [2, 32], strides = [1, 1]} : vector<2x128xf32> to vector<2x32xf32>
    %87 = arith.mulf %84, %72 : vector<2x32xf32>
    %88 = arith.mulf %83, %85 : vector<2x32xf32>
    %89 = arith.addf %87, %88 : vector<2x32xf32>
    %90 = math.tanh %89 : vector<2x32xf32>
    %91 = arith.mulf %86, %90 : vector<2x32xf32>
    %92 = vector.extract_strided_slice %8 {offsets = [8, 0], sizes = [2, 128], strides = [1, 1]} : vector<16x128xf32> to vector<2x128xf32>
    %cst_19 = arith.constant dense<0.000000e+00> : vector<2x128xf32>
    %93 = tpu.matmul %91, %9, %cst_19 {dimension_numbers = #tpu.dot_dimension_numbers<[1], [0], [0], [1], [0, 0, 1, 1], [], []>} : vector<2x32xf32>, vector<32x128xf32>, vector<2x128xf32> -> vector<2x128xf32>
    %94 = arith.addf %92, %93 : vector<2x128xf32>
    %95 = math.tanh %94 : vector<2x128xf32>
    %96 = vector.broadcast %20 : vector<1x128xf32> to vector<2x128xf32>
    %97 = arith.mulf %95, %96 : vector<2x128xf32>
    %98 = vector.broadcast %23 : vector<1x128xf32> to vector<2x128xf32>
    %99 = arith.addf %97, %98 : vector<2x128xf32>
    %100 = vector.extract_strided_slice %99 {offsets = [0, 0], sizes = [2, 32], strides = [1, 1]} : vector<2x128xf32> to vector<2x32xf32>
    %101 = vector.extract_strided_slice %99 {offsets = [0, 32], sizes = [2, 32], strides = [1, 1]} : vector<2x128xf32> to vector<2x32xf32>
    %102 = vector.extract_strided_slice %99 {offsets = [0, 64], sizes = [2, 32], strides = [1, 1]} : vector<2x128xf32> to vector<2x32xf32>
    %103 = vector.extract_strided_slice %99 {offsets = [0, 96], sizes = [2, 32], strides = [1, 1]} : vector<2x128xf32> to vector<2x32xf32>
    %104 = arith.mulf %101, %89 : vector<2x32xf32>
    %105 = arith.mulf %100, %102 : vector<2x32xf32>
    %106 = arith.addf %104, %105 : vector<2x32xf32>
    %107 = math.tanh %106 : vector<2x32xf32>
    %108 = arith.mulf %103, %107 : vector<2x32xf32>
    %109 = vector.extract_strided_slice %8 {offsets = [10, 0], sizes = [2, 128], strides = [1, 1]} : vector<16x128xf32> to vector<2x128xf32>
    %cst_20 = arith.constant dense<0.000000e+00> : vector<2x128xf32>
    %110 = tpu.matmul %108, %9, %cst_20 {dimension_numbers = #tpu.dot_dimension_numbers<[1], [0], [0], [1], [0, 0, 1, 1], [], []>} : vector<2x32xf32>, vector<32x128xf32>, vector<2x128xf32> -> vector<2x128xf32>
    %111 = arith.addf %109, %110 : vector<2x128xf32>
    %112 = math.tanh %111 : vector<2x128xf32>
    %113 = vector.broadcast %20 : vector<1x128xf32> to vector<2x128xf32>
    %114 = arith.mulf %112, %113 : vector<2x128xf32>
    %115 = vector.broadcast %23 : vector<1x128xf32> to vector<2x128xf32>
    %116 = arith.addf %114, %115 : vector<2x128xf32>
    %117 = vector.extract_strided_slice %116 {offsets = [0, 0], sizes = [2, 32], strides = [1, 1]} : vector<2x128xf32> to vector<2x32xf32>
    %118 = vector.extract_strided_slice %116 {offsets = [0, 32], sizes = [2, 32], strides = [1, 1]} : vector<2x128xf32> to vector<2x32xf32>
    %119 = vector.extract_strided_slice %116 {offsets = [0, 64], sizes = [2, 32], strides = [1, 1]} : vector<2x128xf32> to vector<2x32xf32>
    %120 = vector.extract_strided_slice %116 {offsets = [0, 96], sizes = [2, 32], strides = [1, 1]} : vector<2x128xf32> to vector<2x32xf32>
    %121 = arith.mulf %118, %106 : vector<2x32xf32>
    %122 = arith.mulf %117, %119 : vector<2x32xf32>
    %123 = arith.addf %121, %122 : vector<2x32xf32>
    %124 = math.tanh %123 : vector<2x32xf32>
    %125 = arith.mulf %120, %124 : vector<2x32xf32>
    %126 = vector.extract_strided_slice %8 {offsets = [12, 0], sizes = [2, 128], strides = [1, 1]} : vector<16x128xf32> to vector<2x128xf32>
    %cst_21 = arith.constant dense<0.000000e+00> : vector<2x128xf32>
    %127 = tpu.matmul %125, %9, %cst_21 {dimension_numbers = #tpu.dot_dimension_numbers<[1], [0], [0], [1], [0, 0, 1, 1], [], []>} : vector<2x32xf32>, vector<32x128xf32>, vector<2x128xf32> -> vector<2x128xf32>
    %128 = arith.addf %126, %127 : vector<2x128xf32>
    %129 = math.tanh %128 : vector<2x128xf32>
    %130 = vector.broadcast %20 : vector<1x128xf32> to vector<2x128xf32>
    %131 = arith.mulf %129, %130 : vector<2x128xf32>
    %132 = vector.broadcast %23 : vector<1x128xf32> to vector<2x128xf32>
    %133 = arith.addf %131, %132 : vector<2x128xf32>
    %134 = vector.extract_strided_slice %133 {offsets = [0, 0], sizes = [2, 32], strides = [1, 1]} : vector<2x128xf32> to vector<2x32xf32>
    %135 = vector.extract_strided_slice %133 {offsets = [0, 32], sizes = [2, 32], strides = [1, 1]} : vector<2x128xf32> to vector<2x32xf32>
    %136 = vector.extract_strided_slice %133 {offsets = [0, 64], sizes = [2, 32], strides = [1, 1]} : vector<2x128xf32> to vector<2x32xf32>
    %137 = vector.extract_strided_slice %133 {offsets = [0, 96], sizes = [2, 32], strides = [1, 1]} : vector<2x128xf32> to vector<2x32xf32>
    %138 = arith.mulf %135, %123 : vector<2x32xf32>
    %139 = arith.mulf %134, %136 : vector<2x32xf32>
    %140 = arith.addf %138, %139 : vector<2x32xf32>
    %141 = math.tanh %140 : vector<2x32xf32>
    %142 = arith.mulf %137, %141 : vector<2x32xf32>
    %143 = vector.extract_strided_slice %8 {offsets = [14, 0], sizes = [2, 128], strides = [1, 1]} : vector<16x128xf32> to vector<2x128xf32>
    %cst_22 = arith.constant dense<0.000000e+00> : vector<2x128xf32>
    %144 = tpu.matmul %142, %9, %cst_22 {dimension_numbers = #tpu.dot_dimension_numbers<[1], [0], [0], [1], [0, 0, 1, 1], [], []>} : vector<2x32xf32>, vector<32x128xf32>, vector<2x128xf32> -> vector<2x128xf32>
    %145 = arith.addf %143, %144 : vector<2x128xf32>
    %146 = math.tanh %145 : vector<2x128xf32>
    %147 = vector.broadcast %20 : vector<1x128xf32> to vector<2x128xf32>
    %148 = arith.mulf %146, %147 : vector<2x128xf32>
    %149 = vector.broadcast %23 : vector<1x128xf32> to vector<2x128xf32>
    %150 = arith.addf %148, %149 : vector<2x128xf32>
    %151 = vector.extract_strided_slice %150 {offsets = [0, 0], sizes = [2, 32], strides = [1, 1]} : vector<2x128xf32> to vector<2x32xf32>
    %152 = vector.extract_strided_slice %150 {offsets = [0, 32], sizes = [2, 32], strides = [1, 1]} : vector<2x128xf32> to vector<2x32xf32>
    %153 = vector.extract_strided_slice %150 {offsets = [0, 64], sizes = [2, 32], strides = [1, 1]} : vector<2x128xf32> to vector<2x32xf32>
    %154 = vector.extract_strided_slice %150 {offsets = [0, 96], sizes = [2, 32], strides = [1, 1]} : vector<2x128xf32> to vector<2x32xf32>
    %155 = arith.mulf %152, %140 : vector<2x32xf32>
    %156 = arith.mulf %151, %153 : vector<2x32xf32>
    %157 = arith.addf %155, %156 : vector<2x32xf32>
    %158 = math.tanh %157 : vector<2x32xf32>
    %159 = arith.mulf %154, %158 : vector<2x32xf32>
    %c0_23 = arith.constant 0 : index
    %c0_24 = arith.constant 0 : index
    %160 = vector.load %arg8[%c0_23, %c0_24] : memref<2x32xf32, #tpu.memory_space<vmem>>, vector<2x32xf32>
    tpu.vector_store %arg8[%c0_23, %c0_24], %159 {strides = array<i32>} : memref<2x32xf32, #tpu.memory_space<vmem>>, vector<2x32xf32>,
    %c0_25 = arith.constant 0 : index
    %c0_26 = arith.constant 0 : index
    %161 = vector.load %arg9[%c0_25, %c0_26] : memref<2x32xf32, #tpu.memory_space<vmem>>, vector<2x32xf32>
    tpu.vector_store %arg9[%c0_25, %c0_26], %157 {strides = array<i32>} : memref<2x32xf32, #tpu.memory_space<vmem>>, vector<2x32xf32>,
    %162 = tpu.concatenate %40, %57, %74, %91, %108, %125, %142, %159 in 0 : vector<2x32xf32>, vector<2x32xf32>, vector<2x32xf32>, vector<2x32xf32>, vector<2x32xf32>, vector<2x32xf32>, vector<2x32xf32>, vector<2x32xf32> -> vector<16x32xf32>
    %c0_27 = arith.constant 0 : index
    %c0_28 = arith.constant 0 : index
    %163 = vector.load %arg5[%c0_27, %c0_28] : memref<32x128xf32, #tpu.memory_space<vmem>>, vector<32x128xf32>
    %cst_29 = arith.constant dense<0.000000e+00> : vector<16x128xf32>
    %164 = tpu.matmul %162, %163, %cst_29 {dimension_numbers = #tpu.dot_dimension_numbers<[1], [0], [0], [1], [0, 0, 1, 1], [], []>} : vector<16x32xf32>, vector<32x128xf32>, vector<16x128xf32> -> vector<16x128xf32>
    %c0_30 = arith.constant 0 : index
    %c0_31 = arith.constant 0 : index
    %165 = vector.load %arg6[%c0_30, %c0_31] : memref<1x128xf32, #tpu.memory_space<vmem>>, vector<1x128xf32>
    %166 = vector.broadcast %165 : vector<1x128xf32> to vector<16x128xf32>
    %167 = arith.addf %164, %166 : vector<16x128xf32>
    %c0_32 = arith.constant 0 : index
    %c0_33 = arith.constant 0 : index
    %168 = vector.load %arg7[%c0_32, %c0_33] : memref<16x128xf32, #tpu.memory_space<vmem>>, vector<16x128xf32>
    tpu.vector_store %arg7[%c0_32, %c0_33], %167 {strides = array<i32>} : memref<16x128xf32, #tpu.memory_space<vmem>>, vector<16x128xf32>,
    return
  }
}

</mosaic_0001>

<llo_original>
// kernel: ynnet_forward.1
$region0: #{ynnet_forward.1}
  #allocation0 [shape = 'u32[]', space=smem, size = 0x4, offset = 0x4, fixed_abs, tag = 'smem constant byte address 0x4 - core index']
  #allocation1 [shape = 'u32[72,128]{1,0:T(1,128)}', space=vmem, size = 0x9000, scoped, tag = 'internal scratch']
  %s0 = inlined_call_operand.vmem [shape: s32[16,1], index: 0, kind: input, shape index: {}]
  %s1 = inlined_call_operand.hbm [shape: f32[64,128], index: 1, kind: input, shape index: {}]
  %s2 = inlined_call_operand.vmem [shape: f32[32,128], index: 2, kind: input, shape index: {}]
  %s3 = inlined_call_operand.vmem [shape: f32[2,32], index: 3, kind: input, shape index: {}]
  %s4 = inlined_call_operand.vmem [shape: f32[2,32], index: 4, kind: input, shape index: {}]
  %s5 = inlined_call_operand.hbm [shape: f32[32,128], index: 5, kind: input, shape index: {}]
  %s6 = inlined_call_operand.vmem [shape: f32[1,128], index: 6, kind: input, shape index: {}]
  %s7 = inlined_call_operand.hbm [shape: f32[16,128], index: 7, kind: output, shape index: {0}]
  %s8 = inlined_call_operand.hbm [shape: f32[2,32], index: 8, kind: output, shape index: {1}]
  %s9 = inlined_call_operand.hbm [shape: f32[2,32], index: 9, kind: output, shape index: {2}]
  %10 = xla_tuple %s7, %s8, %s9
  %s11 = sld [smem:[#allocation0]]
  $region62: #{ynnet_forward.1} parent=0
    _
  %s13 = ssub.s32 1, %s11
  %s14 = scalar_select 0, %s13, %s11
  $region1: #{ynnet_forward.1} parent=0
    #allocation2 [shape = 'u8[32768]{0}', space=vmem, size = 0x8000, scoped, tag = 'input window, operand 1, single buffered']
    #allocation3 [shape = 's32[1]{0}', space=sflag, size = 0x4, scoped, tag = 'scoped memory for ynnet_forward.1']
    #allocation4 [shape = 's32[1]{0}', space=sflag, size = 0x4, scoped, tag = 'scoped memory for ynnet_forward.1']
    #allocation5 [shape = 'u8[16384]{0}', space=vmem, size = 0x4000, scoped, tag = 'input window, operand 5, single buffered']
    #allocation6 [shape = 's32[1]{0}', space=sflag, size = 0x4, scoped, tag = 'scoped memory for ynnet_forward.1']
    #allocation7 [shape = 'u8[8192]{0}', space=vmem, size = 0x2000, scoped, tag = 'output window, operand 0, single buffered']
    #allocation8 [shape = 'u8[1024]{0}', space=vmem, size = 0x400, scoped, tag = 'output window, operand 1, single buffered']
    #allocation9 [shape = 's32[1]{0}', space=sflag, size = 0x4, scoped, tag = 'scoped memory for ynnet_forward.1']
    #allocation10 [shape = 'u8[1024]{0}', space=vmem, size = 0x400, scoped, tag = 'output window, operand 2, single buffered']
    %15 = vsyncpa [#allocation3], 0
    %16 = vsyncpa [#allocation6], 0
    %17 = vsyncpa [#allocation4], 0
    %18 = vsyncpa [#allocation9], 0
    // Predicated region
    $region2: #{ynnet_forward.1} parent=1 // pred_check
      _
    $region3: #{ynnet_forward.1} parent=1 // pred_check_branch
      %20 = sbr.rel (0) target = $region5
    $region4: #{ynnet_forward.1} parent=1 // pred_region
      _
    $region5: #{ynnet_forward.1} parent=1 // pred_fallthru
      _
    // Predicated region
    $region6: #{ynnet_forward.1} parent=1 // pred_check
      _
    $region7: #{ynnet_forward.1} parent=1 // pred_check_branch
      %22 = sbr.rel (0) target = $region9
    $region8: #{ynnet_forward.1} parent=1 // pred_region
      %24 = vsyncadd [#allocation3], 0
      %s25 = sshll.u32 %s1, 4
      %s26 = int_to_ptr.hbm [resolvable:$true] %s25
      %s27 = sshll.u32 [#allocation2], 4
      %s28 = int_to_ptr.vmem [resolvable:$true] %s27
      %33 = dma.hbm_to_vmem [thread:$0]  %s26, 1024, %s28, [#allocation3], 128, 128, 8
    $region9: #{ynnet_forward.1} parent=1 // pred_fallthru
      _
    // Predicated region
    $region10: #{ynnet_forward.1} parent=1 // pred_check
      _
    $region11: #{ynnet_forward.1} parent=1 // pred_check_branch
      %35 = sbr.rel (0) target = $region13
    $region12: #{ynnet_forward.1} parent=1 // pred_region
      _
    $region13: #{ynnet_forward.1} parent=1 // pred_fallthru
      _
    // Predicated region
    $region14: #{ynnet_forward.1} parent=1 // pred_check
      _
    $region15: #{ynnet_forward.1} parent=1 // pred_check_branch
      %37 = sbr.rel (0) target = $region17
    $region16: #{ynnet_forward.1} parent=1 // pred_region
      _
    $region17: #{ynnet_forward.1} parent=1 // pred_fallthru
      _
    // Predicated region
    $region18: #{ynnet_forward.1} parent=1 // pred_check
      _
    $region19: #{ynnet_forward.1} parent=1 // pred_check_branch
      %39 = sbr.rel (0) target = $region21
    $region20: #{ynnet_forward.1} parent=1 // pred_region
      _
    $region21: #{ynnet_forward.1} parent=1 // pred_fallthru
      _
    // Predicated region
    $region22: #{ynnet_forward.1} parent=1 // pred_check
      _
    $region23: #{ynnet_forward.1} parent=1 // pred_check_branch
      %41 = sbr.rel (0) target = $region25
    $region24: #{ynnet_forward.1} parent=1 // pred_region
      %43 = vsyncadd [#allocation6], 0
      %s44 = sshll.u32 %s5, 4
      %s45 = int_to_ptr.hbm [resolvable:$true] %s44
      %s46 = sshll.u32 [#allocation5], 4
      %s47 = int_to_ptr.vmem [resolvable:$true] %s46
      %52 = dma.hbm_to_vmem [thread:$0]  %s45, 512, %s47, [#allocation6], 128, 128, 8
    $region25: #{ynnet_forward.1} parent=1 // pred_fallthru
      _
    // Predicated region
    $region26: #{ynnet_forward.1} parent=1 // pred_check
      _
    $region27: #{ynnet_forward.1} parent=1 // pred_check_branch
      %54 = sbr.rel (0) target = $region29
    $region28: #{ynnet_forward.1} parent=1 // pred_region
      _
    $region29: #{ynnet_forward.1} parent=1 // pred_fallthru
      _
    // Predicated region
    $region30: #{ynnet_forward.1} parent=1 // pred_check
      _
    $region31: #{ynnet_forward.1} parent=1 // pred_check_branch
      %56 = sbr.rel (0) target = $region33
    $region32: #{ynnet_forward.1} parent=1 // pred_region
      %58 = dma.done [#allocation3], 1024
    $region33: #{ynnet_forward.1} parent=1 // pred_fallthru
      _
    // Predicated region
    $region34: #{ynnet_forward.1} parent=1 // pred_check
      _
    $region35: #{ynnet_forward.1} parent=1 // pred_check_branch
      %60 = sbr.rel (0) target = $region37
    $region36: #{ynnet_forward.1} parent=1 // pred_region
      %62 = dma.done [#allocation6], 512
    $region37: #{ynnet_forward.1} parent=1 // pred_fallthru
      _
    %v63 = vld [vmem:[%s0] sm:$0xff]
    %v64 = vld [vmem:[%s0 + $0x8] sm:$0xff]
    %v65 = vlaneseq
    %v66 = vand.u32 %v65, 127
    %67 = vset.pattern.permute.xlu0 0
    %68 = vperm.xlu0 %67, %v63
    %v69 = vpop.permute.xlu0 %68
    %70 = vset.pattern.permute.xlu0 0
    %71 = vperm.xlu0 %70, %v64
    %v72 = vpop.permute.xlu0 %71
    %vm73 = vcmp.eq.s32.totalorder %v69, %v66
    %vm74 = vcmp.eq.s32.totalorder %v72, %v66
    %v75 = vsel %vm73, 1.0, 0.0
    %v76 = vsel %vm74, 1.0, 0.0
    %v77 = vld [vmem:[#allocation2] sm:$0xff]
    %v78 = vld [vmem:[#allocation2 + $0x8] sm:$0xff]
    %v79 = vld [vmem:[#allocation2 + $0x10] sm:$0xff]
    %v80 = vld [vmem:[#allocation2 + $0x18] sm:$0xff]
    %v81 = vld [vmem:[#allocation2 + $0x20] sm:$0xff]
    %v82 = vld [vmem:[#allocation2 + $0x28] sm:$0xff]
    %v83 = vld [vmem:[#allocation2 + $0x30] sm:$0xff]
    %v84 = vld [vmem:[#allocation2 + $0x38] sm:$0xff]
    %vm85 = vcmask 523264
    %v87 = vsel %vm85, %v75, 0
    %v90 = vsel %vm85, %v76, 0
    %92 = vmatpush.msra.mxu0 0.0
    %93 = vmatpush.msra.mxu0 0.0
    %94 = vmatpush.msra.mxu0 0.0
    %95 = vmatpush.msra.mxu0 0.0
    %96 = vmatpush.msra.mxu0 0.0
    %97 = vmatpush.msra.mxu0 0.0
    %98 = vmatpush.msra.mxu0 0.0
    %99 = vmatpush.msra.mxu0 0.0
    %100 = vmatpush.msra.mxu0 %v84
    %101 = vmatpush.msra.mxu0 %v83
    %102 = vmatpush.msra.mxu0 %v82
    %103 = vmatpush.msra.mxu0 %v81
    %104 = vmatpush.msra.mxu0 %v80
    %105 = vmatpush.msra.mxu0 %v79
    %106 = vmatpush.msra.mxu0 %v78
    %107 = vmatpush.msra.mxu0 %v77
    %108 = vmatmul.f32.gmra.mxu0 %v87
    %v109 = vpop.f32.mrf.mxu0
    %v110 = vadd.f32 0.0, %v109
    %111 = vmatmul.f32.gmra.mxu0 %v90
    %v112 = vpop.f32.mrf.mxu0
    %v113 = vadd.f32 0.0, %v112
    %114 = vdwg.mxu0
    %v115 = vld [vmem:[%s2] sm:$0xff]
    %v116 = vld [vmem:[%s2 + $0x8] sm:$0xff]
    %v117 = vld [vmem:[%s2 + $0x10] sm:$0xff]
    %v118 = vld [vmem:[%s2 + $0x18] sm:$0xff]
    %v119 = vld [vmem:[%s3] sm:$0x3]
    %v120 = vld [vmem:[%s4] sm:$0x3]
    %vm121 = vcmp.ge.s32.totalorder %v66, 64
    %vm122 = vcmp.lt.s32.totalorder %v66, 96
    %vm123 = vmand %vm121, %vm122
    %v124 = vsel %vm123, 1.0, 0.5
    %v125 = vsel %vm123, 0.0, 0.5
    %vm126 = vcmask 261120
    %v128 = vsel %vm126, %v119, 0
    %130 = vmatpush.msra.mxu0 0.0
    %131 = vmatpush.msra.mxu0 0.0
    %132 = vmatpush.msra.mxu0 0.0
    %133 = vmatpush.msra.mxu0 0.0
    %134 = vmatpush.msra.mxu0 0.0
    %135 = vmatpush.msra.mxu0 0.0
    %136 = vmatpush.msra.mxu0 0.0
    %137 = vmatpush.msra.mxu0 0.0
    %138 = vmatpush.msra.mxu0 0.0
    %139 = vmatpush.msra.mxu0 0.0
    %140 = vmatpush.msra.mxu0 0.0
    %141 = vmatpush.msra.mxu0 0.0
    %142 = vmatpush.msra.mxu0 %v118
    %143 = vmatpush.msra.mxu0 %v117
    %144 = vmatpush.msra.mxu0 %v116
    %145 = vmatpush.msra.mxu0 %v115
    %146 = vmatmul.f32.gmra.mxu0 %v128
    %v147 = vpop.f32.mrf.mxu0
    %v148 = vadd.f32 0.0, %v147
    %149 = vdwg.mxu0
    %v150 = vadd.f32 %v110, %v148
    %v151 = vtanh.pop %v150
    %v152 = vmul.f32 %v151, %v124
    %v153 = vadd.f32 %v152, %v125
    %155 = vrot.lane.b32.xlu0 %v120, 32
    %v156 = vpop.permute.xlu0 %155
    %v158 = vmul.f32 %v153, %v156
    %160 = vrot.lane.b32.xlu0 %v153, 64
    %v161 = vpop.permute.xlu0 %160
    %v163 = vmul.f32 %v153, %v161
    %165 = vrot.lane.b32.xlu0 %v163, 32
    %v166 = vpop.permute.xlu0 %165
    %v168 = vadd.f32 %v158, %v166
    %v169 = vtanh.pop %v168
    %171 = vrot.lane.b32.xlu0 %v169, 64
    %v172 = vpop.permute.xlu0 %171
    %v174 = vmul.f32 %v153, %v172
    %176 = vrot.lane.b32.xlu0 %v174, 32
    %v177 = vpop.permute.xlu0 %176
    %v178 = vsel %vm126, %v177, 0
    %180 = vmatpush.msra.mxu0 0.0
    %181 = vmatpush.msra.mxu0 0.0
    %182 = vmatpush.msra.mxu0 0.0
    %183 = vmatpush.msra.mxu0 0.0
    %184 = vmatpush.msra.mxu0 0.0
    %185 = vmatpush.msra.mxu0 0.0
    %186 = vmatpush.msra.mxu0 0.0
    %187 = vmatpush.msra.mxu0 0.0
    %188 = vmatpush.msra.mxu0 0.0
    %189 = vmatpush.msra.mxu0 0.0
    %190 = vmatpush.msra.mxu0 0.0
    %191 = vmatpush.msra.mxu0 0.0
    %192 = vmatpush.msra.mxu0 %v118
    %193 = vmatpush.msra.mxu0 %v117
    %194 = vmatpush.msra.mxu0 %v116
    %195 = vmatpush.msra.mxu0 %v115
    %196 = vmatmul.f32.gmra.mxu0 %v178
    %v197 = vpop.f32.mrf.mxu0
    %v198 = vadd.f32 0.0, %v197
    %199 = vdwg.mxu0
    %v201 = vrot.slane %v198, 6
    %v203 = vadd.f32 %v110, %v201
    %v204 = vtanh.pop %v203
    %v205 = vmul.f32 %v204, %v124
    %v206 = vadd.f32 %v205, %v125
    %v208 = vrot.slane %v168, 6
    %v210 = vmul.f32 %v206, %v208
    %212 = vrot.lane.b32.xlu0 %v206, 64
    %v213 = vpop.permute.xlu0 %212
    %v215 = vmul.f32 %v206, %v213
    %217 = vrot.lane.b32.xlu0 %v215, 32
    %v218 = vpop.permute.xlu0 %217
    %v220 = vadd.f32 %v210, %v218
    %v221 = vtanh.pop %v220
    %223 = vrot.lane.b32.xlu0 %v221, 64
    %v224 = vpop.permute.xlu0 %223
    %v226 = vmul.f32 %v206, %v224
    %v228 = vrot.slane %v226, 2
    %229 = vrot.lane.b32.xlu0 %v228, 32
    %v230 = vpop.permute.xlu0 %229
    %v231 = vsel %vm126, %v230, 0
    %233 = vmatpush.msra.mxu0 0.0
    %234 = vmatpush.msra.mxu0 0.0
    %235 = vmatpush.msra.mxu0 0.0
    %236 = vmatpush.msra.mxu0 0.0
    %237 = vmatpush.msra.mxu0 0.0
    %238 = vmatpush.msra.mxu0 0.0
    %239 = vmatpush.msra.mxu0 0.0
    %240 = vmatpush.msra.mxu0 0.0
    %241 = vmatpush.msra.mxu0 0.0
    %242 = vmatpush.msra.mxu0 0.0
    %243 = vmatpush.msra.mxu0 0.0
    %244 = vmatpush.msra.mxu0 0.0
    %245 = vmatpush.msra.mxu0 %v118
    %246 = vmatpush.msra.mxu0 %v117
    %247 = vmatpush.msra.mxu0 %v116
    %248 = vmatpush.msra.mxu0 %v115
    %249 = vmatmul.f32.gmra.mxu0 %v231
    %v250 = vpop.f32.mrf.mxu0
    %v251 = vadd.f32 0.0, %v250
    %252 = vdwg.mxu0
    %v254 = vrot.slane %v251, 4
    %v256 = vadd.f32 %v110, %v254
    %v257 = vtanh.pop %v256
    %v258 = vmul.f32 %v257, %v124
    %v259 = vadd.f32 %v258, %v125
    %v261 = vrot.slane %v220, 6
    %v263 = vmul.f32 %v259, %v261
    %265 = vrot.lane.b32.xlu0 %v259, 64
    %v266 = vpop.permute.xlu0 %265
    %v268 = vmul.f32 %v259, %v266
    %270 = vrot.lane.b32.xlu0 %v268, 32
    %v271 = vpop.permute.xlu0 %270
    %v273 = vadd.f32 %v263, %v271
    %v274 = vtanh.pop %v273
    %276 = vrot.lane.b32.xlu0 %v274, 64
    %v277 = vpop.permute.xlu0 %276
    %v279 = vmul.f32 %v259, %v277
    %v281 = vrot.slane %v279, 4
    %282 = vrot.lane.b32.xlu0 %v281, 32
    %v283 = vpop.permute.xlu0 %282
    %v284 = vsel %vm126, %v283, 0
    %286 = vmatpush.msra.mxu0 0.0
    %287 = vmatpush.msra.mxu0 0.0
    %288 = vmatpush.msra.mxu0 0.0
    %289 = vmatpush.msra.mxu0 0.0
    %290 = vmatpush.msra.mxu0 0.0
    %291 = vmatpush.msra.mxu0 0.0
    %292 = vmatpush.msra.mxu0 0.0
    %293 = vmatpush.msra.mxu0 0.0
    %294 = vmatpush.msra.mxu0 0.0
    %295 = vmatpush.msra.mxu0 0.0
    %296 = vmatpush.msra.mxu0 0.0
    %297 = vmatpush.msra.mxu0 0.0
    %298 = vmatpush.msra.mxu0 %v118
    %299 = vmatpush.msra.mxu0 %v117
    %300 = vmatpush.msra.mxu0 %v116
    %301 = vmatpush.msra.mxu0 %v115
    %302 = vmatmul.f32.gmra.mxu0 %v284
    %v303 = vpop.f32.mrf.mxu0
    %v304 = vadd.f32 0.0, %v303
    %305 = vdwg.mxu0
    %v307 = vrot.slane %v304, 2
    %v309 = vadd.f32 %v110, %v307
    %v310 = vtanh.pop %v309
    %v311 = vmul.f32 %v310, %v124
    %v312 = vadd.f32 %v311, %v125
    %v314 = vrot.slane %v273, 6
    %v316 = vmul.f32 %v312, %v314
    %318 = vrot.lane.b32.xlu0 %v312, 64
    %v319 = vpop.permute.xlu0 %318
    %v321 = vmul.f32 %v312, %v319
    %323 = vrot.lane.b32.xlu0 %v321, 32
    %v324 = vpop.permute.xlu0 %323
    %v326 = vadd.f32 %v316, %v324
    %v327 = vtanh.pop %v326
    %329 = vrot.lane.b32.xlu0 %v327, 64
    %v330 = vpop.permute.xlu0 %329
    %v332 = vmul.f32 %v312, %v330
    %v334 = vrot.slane %v332, 6
    %335 = vrot.lane.b32.xlu0 %v334, 32
    %v336 = vpop.permute.xlu0 %335
    %v337 = vsel %vm126, %v336, 0
    %339 = vmatpush.msra.mxu0 0.0
    %340 = vmatpush.msra.mxu0 0.0
    %341 = vmatpush.msra.mxu0 0.0
    %342 = vmatpush.msra.mxu0 0.0
    %343 = vmatpush.msra.mxu0 0.0
    %344 = vmatpush.msra.mxu0 0.0
    %345 = vmatpush.msra.mxu0 0.0
    %346 = vmatpush.msra.mxu0 0.0
    %347 = vmatpush.msra.mxu0 0.0
    %348 = vmatpush.msra.mxu0 0.0
    %349 = vmatpush.msra.mxu0 0.0
    %350 = vmatpush.msra.mxu0 0.0
    %351 = vmatpush.msra.mxu0 %v118
    %352 = vmatpush.msra.mxu0 %v117
    %353 = vmatpush.msra.mxu0 %v116
    %354 = vmatpush.msra.mxu0 %v115
    %355 = vmatmul.f32.gmra.mxu0 %v337
    %v356 = vpop.f32.mrf.mxu0
    %v357 = vadd.f32 0.0, %v356
    %358 = vdwg.mxu0
    %v359 = vadd.f32 %v113, %v357
    %v360 = vtanh.pop %v359
    %v361 = vmul.f32 %v360, %v124
    %v362 = vadd.f32 %v361, %v125
    %v364 = vrot.slane %v326, 6
    %v366 = vmul.f32 %v362, %v364
    %368 = vrot.lane.b32.xlu0 %v362, 64
    %v369 = vpop.permute.xlu0 %368
    %v371 = vmul.f32 %v362, %v369
    %373 = vrot.lane.b32.xlu0 %v371, 32
    %v374 = vpop.permute.xlu0 %373
    %v376 = vadd.f32 %v366, %v374
    %v377 = vtanh.pop %v376
    %379 = vrot.lane.b32.xlu0 %v377, 64
    %v380 = vpop.permute.xlu0 %379
    %v382 = vmul.f32 %v362, %v380
    %384 = vrot.lane.b32.xlu0 %v382, 32
    %v385 = vpop.permute.xlu0 %384
    %v386 = vsel %vm126, %v385, 0
    %388 = vmatpush.msra.mxu0 0.0
    %389 = vmatpush.msra.mxu0 0.0
    %390 = vmatpush.msra.mxu0 0.0
    %391 = vmatpush.msra.mxu0 0.0
    %392 = vmatpush.msra.mxu0 0.0
    %393 = vmatpush.msra.mxu0 0.0
    %394 = vmatpush.msra.mxu0 0.0
    %395 = vmatpush.msra.mxu0 0.0
    %396 = vmatpush.msra.mxu0 0.0
    %397 = vmatpush.msra.mxu0 0.0
    %398 = vmatpush.msra.mxu0 0.0
    %399 = vmatpush.msra.mxu0 0.0
    %400 = vmatpush.msra.mxu0 %v118
    %401 = vmatpush.msra.mxu0 %v117
    %402 = vmatpush.msra.mxu0 %v116
    %403 = vmatpush.msra.mxu0 %v115
    %404 = vmatmul.f32.gmra.mxu0 %v386
    %v405 = vpop.f32.mrf.mxu0
    %v406 = vadd.f32 0.0, %v405
    %407 = vdwg.mxu0
    %v409 = vrot.slane %v406, 6
    %v411 = vadd.f32 %v113, %v409
    %v412 = vtanh.pop %v411
    %v413 = vmul.f32 %v412, %v124
    %v414 = vadd.f32 %v413, %v125
    %v416 = vrot.slane %v376, 6
    %v418 = vmul.f32 %v414, %v416
    %420 = vrot.lane.b32.xlu0 %v414, 64
    %v421 = vpop.permute.xlu0 %420
    %v423 = vmul.f32 %v414, %v421
    %425 = vrot.lane.b32.xlu0 %v423, 32
    %v426 = vpop.permute.xlu0 %425
    %v428 = vadd.f32 %v418, %v426
    %v429 = vtanh.pop %v428
    %431 = vrot.lane.b32.xlu0 %v429, 64
    %v432 = vpop.permute.xlu0 %431
    %v434 = vmul.f32 %v414, %v432
    %v436 = vrot.slane %v434, 2
    %437 = vrot.lane.b32.xlu0 %v436, 32
    %v438 = vpop.permute.xlu0 %437
    %v439 = vsel %vm126, %v438, 0
    %441 = vmatpush.msra.mxu0 0.0
    %442 = vmatpush.msra.mxu0 0.0
    %443 = vmatpush.msra.mxu0 0.0
    %444 = vmatpush.msra.mxu0 0.0
    %445 = vmatpush.msra.mxu0 0.0
    %446 = vmatpush.msra.mxu0 0.0
    %447 = vmatpush.msra.mxu0 0.0
    %448 = vmatpush.msra.mxu0 0.0
    %449 = vmatpush.msra.mxu0 0.0
    %450 = vmatpush.msra.mxu0 0.0
    %451 = vmatpush.msra.mxu0 0.0
    %452 = vmatpush.msra.mxu0 0.0
    %453 = vmatpush.msra.mxu0 %v118
    %454 = vmatpush.msra.mxu0 %v117
    %455 = vmatpush.msra.mxu0 %v116
    %456 = vmatpush.msra.mxu0 %v115
    %457 = vmatmul.f32.gmra.mxu0 %v439
    %v458 = vpop.f32.mrf.mxu0
    %v459 = vadd.f32 0.0, %v458
    %460 = vdwg.mxu0
    %v462 = vrot.slane %v459, 4
    %v464 = vadd.f32 %v113, %v462
    %v465 = vtanh.pop %v464
    %v466 = vmul.f32 %v465, %v124
    %v467 = vadd.f32 %v466, %v125
    %v469 = vrot.slane %v428, 6
    %v471 = vmul.f32 %v467, %v469
    %473 = vrot.lane.b32.xlu0 %v467, 64
    %v474 = vpop.permute.xlu0 %473
    %v476 = vmul.f32 %v467, %v474
    %478 = vrot.lane.b32.xlu0 %v476, 32
    %v479 = vpop.permute.xlu0 %478
    %v481 = vadd.f32 %v471, %v479
    %v482 = vtanh.pop %v481
    %484 = vrot.lane.b32.xlu0 %v482, 64
    %v485 = vpop.permute.xlu0 %484
    %v487 = vmul.f32 %v467, %v485
    %v489 = vrot.slane %v487, 4
    %490 = vrot.lane.b32.xlu0 %v489, 32
    %v491 = vpop.permute.xlu0 %490
    %v492 = vsel %vm126, %v491, 0
    %494 = vmatpush.msra.mxu0 0.0
    %495 = vmatpush.msra.mxu0 0.0
    %496 = vmatpush.msra.mxu0 0.0
    %497 = vmatpush.msra.mxu0 0.0
    %498 = vmatpush.msra.mxu0 0.0
    %499 = vmatpush.msra.mxu0 0.0
    %500 = vmatpush.msra.mxu0 0.0
    %501 = vmatpush.msra.mxu0 0.0
    %502 = vmatpush.msra.mxu0 0.0
    %503 = vmatpush.msra.mxu0 0.0
    %504 = vmatpush.msra.mxu0 0.0
    %505 = vmatpush.msra.mxu0 0.0
    %506 = vmatpush.msra.mxu0 %v118
    %507 = vmatpush.msra.mxu0 %v117
    %508 = vmatpush.msra.mxu0 %v116
    %509 = vmatpush.msra.mxu0 %v115
    %510 = vmatmul.f32.gmra.mxu0 %v492
    %v511 = vpop.f32.mrf.mxu0
    %v512 = vadd.f32 0.0, %v511
    %513 = vdwg.mxu0
    %v515 = vrot.slane %v512, 2
    %v517 = vadd.f32 %v113, %v515
    %v518 = vtanh.pop %v517
    %v519 = vmul.f32 %v518, %v124
    %v520 = vadd.f32 %v519, %v125
    %v522 = vrot.slane %v481, 6
    %v524 = vmul.f32 %v520, %v522
    %526 = vrot.lane.b32.xlu0 %v520, 64
    %v527 = vpop.permute.xlu0 %526
    %v529 = vmul.f32 %v520, %v527
    %531 = vrot.lane.b32.xlu0 %v529, 32
    %v532 = vpop.permute.xlu0 %531
    %v534 = vadd.f32 %v524, %v532
    %v535 = vtanh.pop %v534
    %537 = vrot.lane.b32.xlu0 %v535, 64
    %v538 = vpop.permute.xlu0 %537
    %v540 = vmul.f32 %v520, %v538
    %542 = vrot.lane.b32.xlu0 %v540, 32
    %v543 = vpop.permute.xlu0 %542
    %vm545 = vcmask 261126
    %546 = vst.msk [vmem:[#allocation8 - $0x6] sm:$0xc0] %vm545, %v543
    %548 = vrot.lane.b32.xlu0 %v534, 96
    %v549 = vpop.permute.xlu0 %548
    %551 = vst.msk [vmem:[#allocation10 - $0x6] sm:$0xc0] %vm545, %v549
    %vm552 = vcmask 1041408
    %v553 = vsel %vm552, %v174, %v226
    %vm554 = vcmask 1043456
    %v555 = vsel %vm554, %v553, %v279
    %vm556 = vcmask 1045504
    %v557 = vsel %vm556, %v555, %v332
    %v558 = vsel %vm552, %v382, %v434
    %v559 = vsel %vm554, %v558, %v487
    %v560 = vsel %vm556, %v559, %v540
    %v561 = vld [vmem:[#allocation5] sm:$0xff]
    %v562 = vld [vmem:[#allocation5 + $0x8] sm:$0xff]
    %v563 = vld [vmem:[#allocation5 + $0x10] sm:$0xff]
    %v564 = vld [vmem:[#allocation5 + $0x18] sm:$0xff]
    %v565 = vld [vmem:[%s6] sm:$0x1]
    %v567 = vperm.slane %v565, 0
    %571 = vrot.lane.b32.xlu0 %v557, 32
    %v572 = vpop.permute.xlu0 %571
    %573 = vrot.lane.b32.xlu0 %v560, 32
    %v574 = vpop.permute.xlu0 %573
    %v575 = vsel %vm126, %v572, 0
    %v577 = vsel %vm126, %v574, 0
    %579 = vmatpush.msra.mxu0 0.0
    %580 = vmatpush.msra.mxu0 0.0
    %581 = vmatpush.msra.mxu0 0.0
    %582 = vmatpush.msra.mxu0 0.0
    %583 = vmatpush.msra.mxu0 0.0
    %584 = vmatpush.msra.mxu0 0.0
    %585 = vmatpush.msra.mxu0 0.0
    %586 = vmatpush.msra.mxu0 0.0
    %587 = vmatpush.msra.mxu0 0.0
    %588 = vmatpush.msra.mxu0 0.0
    %589 = vmatpush.msra.mxu0 0.0
    %590 = vmatpush.msra.mxu0 0.0
    %591 = vmatpush.msra.mxu0 %v564
    %592 = vmatpush.msra.mxu0 %v563
    %593 = vmatpush.msra.mxu0 %v562
    %594 = vmatpush.msra.mxu0 %v561
    %595 = vmatmul.f32.gmra.mxu0 %v575
    %v596 = vpop.f32.mrf.mxu0
    %v597 = vadd.f32 %v567, %v596
    %598 = vmatmul.f32.gmra.mxu0 %v577
    %v599 = vpop.f32.mrf.mxu0
    %v600 = vadd.f32 %v567, %v599
    %601 = vdwg.mxu0
    %602 = vst [vmem:[#allocation7] sm:$0xff] %v597
    %603 = vst [vmem:[#allocation7 + $0x8] sm:$0xff] %v600
    // Predicated region
    $region38: #{ynnet_forward.1} parent=1 // pred_check
      _
    $region39: #{ynnet_forward.1} parent=1 // pred_check_branch
      %605 = sbr.rel (0) target = $region41
    $region40: #{ynnet_forward.1} parent=1 // pred_region
      %607 = vsyncadd [#allocation4], 0
      %s608 = sshll.u32 [#allocation7], 4
      %s609 = int_to_ptr.vmem [resolvable:$true] %s608
      %s610 = sshll.u32 %s7, 4
      %s611 = int_to_ptr.hbm [resolvable:$true] %s610
      %616 = dma.vmem_to_hbm [thread:$0]  %s609, 256, %s611, [#allocation4], 128, 128, 8
    $region41: #{ynnet_forward.1} parent=1 // pred_fallthru
      _
    // Predicated region
    $region42: #{ynnet_forward.1} parent=1 // pred_check
      _
    $region43: #{ynnet_forward.1} parent=1 // pred_check_branch
      %618 = sbr.rel (0) target = $region45
    $region44: #{ynnet_forward.1} parent=1 // pred_region
      %620 = vsyncadd [#allocation9], 0
      %s622 = sshll.u32 [#allocation8], 4
      %s623 = int_to_ptr.vmem [resolvable:$true] %s622
      %s624 = sshll.u32 %s8, 4
      %s625 = int_to_ptr.hbm [resolvable:$true] %s624
      %627 = dma.vmem_to_hbm [thread:$0]  %s623, 32, %s625, [#allocation9]
    $region45: #{ynnet_forward.1} parent=1 // pred_fallthru
      _
    // Predicated region
    $region46: #{ynnet_forward.1} parent=1 // pred_check
      _
    $region47: #{ynnet_forward.1} parent=1 // pred_check_branch
      %629 = sbr.rel (0) target = $region49
    $region48: #{ynnet_forward.1} parent=1 // pred_region
      %631 = vsyncadd [#allocation9], 0
      %s633 = sshll.u32 [#allocation10], 4
      %s634 = int_to_ptr.vmem [resolvable:$true] %s633
      %s635 = sshll.u32 %s9, 4
      %s636 = int_to_ptr.hbm [resolvable:$true] %s635
      %638 = dma.vmem_to_hbm [thread:$0]  %s634, 32, %s636, [#allocation9]
    $region49: #{ynnet_forward.1} parent=1 // pred_fallthru
      _
    // Predicated region
    $region50: #{ynnet_forward.1} parent=1 // pred_check
      _
    $region51: #{ynnet_forward.1} parent=1 // pred_check_branch
      %640 = sbr.rel (0) target = $region53
    $region52: #{ynnet_forward.1} parent=1 // pred_region
      %642 = dma.done [#allocation4], 256
    $region53: #{ynnet_forward.1} parent=1 // pred_fallthru
      _
    // Predicated region
    $region54: #{ynnet_forward.1} parent=1 // pred_check
      _
    $region55: #{ynnet_forward.1} parent=1 // pred_check_branch
      %644 = sbr.rel (0) target = $region57
    $region56: #{ynnet_forward.1} parent=1 // pred_region
      %646 = dma.done [#allocation9], 32
    $region57: #{ynnet_forward.1} parent=1 // pred_fallthru
      _
    // Predicated region
    $region58: #{ynnet_forward.1} parent=1 // pred_check
      _
    $region59: #{ynnet_forward.1} parent=1 // pred_check_branch
      %648 = sbr.rel (0) target = $region61
    $region60: #{ynnet_forward.1} parent=1 // pred_region
      %650 = dma.done [#allocation9], 32
    $region61: #{ynnet_forward.1} parent=1 // pred_fallthru
      _
    %651 = vsyncpa [#allocation3], 1
    %652 = vsyncpa [#allocation6], 1
    %653 = vsyncpa [#allocation4], 1
    %654 = vsyncpa [#allocation9], 1

</llo_original>
